<compile_context>
chip_gen: v7x
topology: tpu7x:2x2x1
jax: 0.10.0
libtpu: 0.0.40
codegen_flags: <defaults>
</compile_context>

<pallas_src>
import math
import numpy as np
import jax
import jax.numpy as jnp
from jax.experimental import pallas as pl
from jax.experimental.pallas import tpu as pltpu

_MIB = 1024 * 1024


# ---------------------------------------------------------------------------
# Host-side parameter construction (mirrors AntiAliasInterpolation2d.__init__)
# ---------------------------------------------------------------------------
def gaussian_1d(scale):
    """Normalized 1-D Gaussian taps; outer(g, g) equals the PyTorch 2-D kernel."""
    sigma = (1.0 / scale - 1.0) / 2.0
    ks = 2 * round(sigma * 4) + 1
    ka = ks // 2                       # ks is always odd -> ka == kb
    coords = np.arange(ks, dtype=np.float64)
    mean = (ks - 1) / 2.0
    g = np.exp(-((coords - mean) ** 2) / (2.0 * sigma ** 2))
    g = g / g.sum()
    return g, ka, ks


def blur_toeplitz(n, g, ka):
    """'Same' 1-D convolution with zero padding folded in: conv = T @ x."""
    ks = len(g)
    T = np.zeros((n, n), dtype=np.float64)
    for r in range(n):
        for i in range(ks):
            h = r + i - ka
            if 0 <= h < n:
                T[r, h] += g[i]
    return T


def bilinear_matrix(in_size, out_size):
    """F.interpolate(mode='bilinear', align_corners=True) along one axis: out = M @ in."""
    M = np.zeros((out_size, in_size), dtype=np.float64)
    if out_size == 1:
        M[0, 0] = 1.0
        return M
    for o in range(out_size):
        src = o * (in_size - 1) / (out_size - 1)
        lo = int(math.floor(src))
        hi = min(lo + 1, in_size - 1)
        w = src - lo
        M[o, lo] += 1.0 - w
        M[o, hi] += w
    return M


# ---------------------------------------------------------------------------
# Per-generation VMEM budgeting
# ---------------------------------------------------------------------------
def _vmem_capacity_bytes():
    """Physical VMEM per TensorCore; conservative fallback if the query fails."""
    try:
        return int(pltpu.get_tpu_info().vmem_capacity_bytes)
    except Exception:
        return 64 * _MIB          # v7x per-TC size: safe lower bound everywhere


def _vmem_limits():
    cap = _vmem_capacity_bytes()
    # Scoped limit ~3/4 of physical, capped at 64 MiB: 64 MiB on v5e/v6e
    # (128 MiB physical), 48 MiB on v7x (64 MiB per TC).
    vmem_limit = min(3 * cap // 4, 64 * _MIB)
    budget = (vmem_limit * 85) // 100     # headroom for compiler scratch
    return vmem_limit, budget


def _block_footprint(bc, h, w, out_h, out_w, itemsize):
    """Conservative VMEM bytes for one grid step with a BC-channel block."""
    io = (2 * bc * h * w * itemsize              # double-buffered input block
          + 2 * bc * out_h * out_w * itemsize)   # double-buffered output block
    consts = 2 * (out_h * h * 4 + w * out_w * 2)  # A f32 + B bf16 (count 2 bufs)
    tmps = (bc * h * w * 2                # bf16 copy of x fed to the MXU
            + bc * h * out_w * 4          # t (f32 intermediate)
            + bc * out_h * h * 4          # in-kernel broadcast copy of A (f32)
            + bc * out_h * out_w * 4      # f32 result of the second matmul
            + bc * out_h * out_w * itemsize)   # cast to output dtype before store
    return io + consts + tmps


def _choose_block_channels(nc, h, w, out_h, out_w, itemsize, budget, min_blocks=4):
    # Largest BC whose per-step footprint fits the budget.
    bc_fit = 1
    for bc in range(1, nc + 1):
        if _block_footprint(bc, h, w, out_h, out_w, itemsize) <= budget:
            bc_fit = bc
        else:
            break
    # Keep at least `min_blocks` grid steps so the "parallel" axis can be split
    # across v7x's two TensorCores and the input DMA pipeline can overlap.
    bc_cap = max(1, nc // min_blocks) if nc >= min_blocks else 1
    bc = max(1, min(bc_fit, bc_cap))
    # Prefer a nearby divisor of NC (avoids a ragged, masked tail block) but
    # never shrink the block by more than ~25%.
    for d in range(bc, 0, -1):
        if nc % d == 0:
            if 4 * d >= 3 * bc:
                bc = d
            break
    return bc


# ---------------------------------------------------------------------------
# Pallas kernel
# ---------------------------------------------------------------------------
def make_kernel(BC, H, W, out_h, out_w):
    def kernel(x_ref, a_ref, b_ref, o_ref):
        # x_ref: (BC, H, W) input block; a_ref: (out_h, H) f32; b_ref: (W, out_w) bf16.
        x = x_ref[...]

        # Horizontal pass: merge channel and row dims so the MXU sees one wide
        # matmul (BC*H, W) @ (W, out_w).  The merge is a free re-view when
        # H % 8 == 0 (sublane aligned); otherwise Mosaic inserts a relayout
        # copy (still correct; kernel is HBM-bound so the cost is hidden).
        # TODO(synk): block-banded B for very large W on v5e (dense contraction
        # can flip it MXU-bound there).
        x2 = x.reshape(BC * H, W).astype(jnp.bfloat16)
        t = jnp.dot(x2, b_ref[...], preferred_element_type=jnp.float32)  # (BC*H, out_w)

        # Vertical pass: keep t in f32 (no second rounding) and broadcast A
        # over the channel block in-kernel (cheap fill, saves shipping BC
        # host-side copies of A through HBM every step).
        t3 = t.reshape(BC, H, out_w)
        a_b = jnp.broadcast_to(a_ref[...][None], (BC, out_h, H))
        out = jnp.einsum('boh,bhw->bow', a_b, t3,
                         preferred_element_type=jnp.float32)             # (BC, out_h, out_w)

        o_ref[...] = out.astype(o_ref.dtype)

    return kernel


def _build_call(NC, BC, H, W, out_h, out_w, out_dtype, vmem_limit,
                single_buffer_consts):
    kernel = make_kernel(BC, H, W, out_h, out_w)

    def const_spec(shape):
        idx = lambda i: (0,) * len(shape)
        if single_buffer_consts:
            # Grid-invariant operand: one VMEM buffer is enough.
            return pl.BlockSpec(shape, idx, pipeline_mode=pl.Buffered(1))
        return pl.BlockSpec(shape, idx)

    grid = (pl.cdiv(NC, BC),)   # ragged last block (if any) is masked by Pallas
    return pl.pallas_call(
        kernel,
        out_shape=jax.ShapeDtypeStruct((NC, out_h, out_w), out_dtype),
        grid_spec=pltpu.PrefetchScalarGridSpec(
            num_scalar_prefetch=0,
            grid=grid,
            in_specs=[
                pl.BlockSpec((BC, H, W), lambda i: (i, 0, 0)),
                const_spec((out_h, H)),
                const_spec((W, out_w)),
            ],
            out_specs=pl.BlockSpec((BC, out_h, out_w), lambda i: (i, 0, 0)),
        ),
        compiler_params=pltpu.CompilerParams(
            # Single grid axis over channel blocks; "parallel" lets v7x's two
            # TensorCores split the blocks (neutral on v5e/v6e).
            dimension_semantics=("parallel",),
            vmem_limit_bytes=int(vmem_limit)),
    )


def anti_alias_interpolation2d(x, scale):
    """Pallas implementation of AntiAliasInterpolation2d.forward (x is NCHW)."""
    if scale == 1.0:
        return x

    N, C, H, W = x.shape
    g, ka, _ks = gaussian_1d(scale)
    out_h = int(math.floor(H * scale))
    out_w = int(math.floor(W * scale))

    # Fold pad + separable blur + bilinear resize into per-axis matrices.
    A = bilinear_matrix(H, out_h) @ blur_toeplitz(H, g, ka)        # (out_h, H)
    B = (bilinear_matrix(W, out_w) @ blur_toeplitz(W, g, ka)).T    # (W, out_w)

    vmem_limit, budget = _vmem_limits()

    NC = N * C
    BC = _choose_block_channels(NC, H, W, out_h, out_w, x.dtype.itemsize, budget)

    a_m = jnp.asarray(A, dtype=jnp.float32)     # broadcast over channels in-kernel
    b_m = jnp.asarray(B, dtype=jnp.bfloat16)
    x3 = x.reshape(NC, H, W)                    # free reshape of leading dims

    want_single_buffer = hasattr(pl, "Buffered")

    def run(single_buffer_consts):
        call = _build_call(NC, BC, H, W, out_h, out_w, x.dtype, vmem_limit,
                           single_buffer_consts)
        return jax.block_until_ready(call(x3, a_m, b_m))

    try:
        out = run(want_single_buffer)
    except Exception:
        if not want_single_buffer:
            raise
        # Fallback: some jax versions may not accept pipeline_mode on BlockSpec.
        out = run(False)

    return out.reshape(N, C, out_h, out_w)


# ---------------------------------------------------------------------------
# Exact float64 reference mirroring the PyTorch ops (pad -> conv2d -> interp)
# ---------------------------------------------------------------------------
def reference_numpy(x, scale):
    if scale == 1.0:
        return np.asarray(x)
    x = np.asarray(x, dtype=np.float64)
    N, C, H, W = x.shape
    g, ka, ks = gaussian_1d(scale)
    k2d = np.outer(g, g)
    xp = np.pad(x, ((0, 0), (0, 0), (ka, ka), (ka, ka)))
    conv = np.zeros_like(x)
    for i in range(ks):
        for j in range(ks):
            conv += k2d[i, j] * xp[:, :, i:i + H, j:j + W]
    out_h = int(math.floor(H * scale))
    out_w = int(math.floor(W * scale))
    Ry = bilinear_matrix(H, out_h)
    Rx = bilinear_matrix(W, out_w)
    return np.einsum('oh,nchw,pw->ncop', Ry, conv, Rx)


if __name__ == "__main__":
    scale = 0.5
    key = jax.random.PRNGKey(0)
    x = jax.random.normal(key, (2, 4, 16, 16), dtype=jnp.float32)

    out = jax.block_until_ready(anti_alias_interpolation2d(x, scale))
    assert out.shape == (2, 4, 8, 8)

    ref = reference_numpy(np.asarray(x), scale)
    # bf16 operands (x, B) with f32 accumulation; A and the intermediate stay f32.
    np.testing.assert_allclose(np.asarray(out), ref, rtol=2e-2, atol=2e-2)

    print("KERNEL_OK")
</pallas_src>

<mosaic_0001>
module attributes {stable_mosaic.version = 11 : i64} {
  func.func @kernel(%arg0: i32, %arg1: memref<2x16x16xf32, #tpu.memory_space<vmem>>, %arg2: memref<8x16xf32, #tpu.memory_space<vmem>>, %arg3: memref<16x8xbf16, #tpu.memory_space<vmem>>, %arg4: memref<2x8x8xf32, #tpu.memory_space<vmem>>) attributes {dimension_semantics = [#tpu.dimension_semantics<parallel>], iteration_bounds = array<i64: 4>, scalar_prefetch = 0 : i64, scratch_operands = 0 : i64, tpu.core_type = #tpu.core_type<tc>, window_params = [{transform_indices = @transform_0, window_bounds = array<i64: 2, 16, 16>}, {pipeline_mode = #tpu.pipeline_mode<synchronous>, transform_indices = @transform_1, window_bounds = array<i64: 8, 16>}, {pipeline_mode = #tpu.pipeline_mode<synchronous>, transform_indices = @transform_2, window_bounds = array<i64: 16, 8>}, {transform_indices = @transform_3, window_bounds = array<i64: 2, 8, 8>}]} {
    %c0 = arith.constant 0 : index
    %c0_0 = arith.constant 0 : index
    %c0_1 = arith.constant 0 : index
    %0 = vector.load %arg1[%c0, %c0_0, %c0_1] : memref<2x16x16xf32, #tpu.memory_space<vmem>>, vector<2x16x16xf32>
    %1 = vector.shape_cast %0 : vector<2x16x16xf32> to vector<32x16xf32>
    %2 = arith.truncf %1 : vector<32x16xf32> to vector<32x16xbf16>
    %c0_2 = arith.constant 0 : index
    %c0_3 = arith.constant 0 : index
    %3 = vector.load %arg3[%c0_2, %c0_3] : memref<16x8xbf16, #tpu.memory_space<vmem>>, vector<16x8xbf16>
    %cst = arith.constant dense<0.000000e+00> : vector<32x8xf32>
    %4 = tpu.matmul %2, %3, %cst {dimension_numbers = #tpu.dot_dimension_numbers<[1], [0], [0], [1], [0, 0, 1, 1], [], []>} : vector<32x16xbf16>, vector<16x8xbf16>, vector<32x8xf32> -> vector<32x8xf32>
    %5 = vector.shape_cast %4 : vector<32x8xf32> to vector<2x16x8xf32>
    %c0_4 = arith.constant 0 : index
    %c0_5 = arith.constant 0 : index
    %6 = vector.load %arg2[%c0_4, %c0_5] : memref<8x16xf32, #tpu.memory_space<vmem>>, vector<8x16xf32>
    %7 = vector.shape_cast %6 : vector<8x16xf32> to vector<1x8x16xf32>
    %8 = vector.shape_cast %7 : vector<1x8x16xf32> to vector<1x8x16xf32>
    %9 = vector.broadcast %8 : vector<1x8x16xf32> to vector<2x8x16xf32>
    "tpu.trace_start"() <{level = 10 : i32, message = "boh,bhw->bow"}> : () -> ()
    %cst_6 = arith.constant dense<0.000000e+00> : vector<2x8x8xf32>
    %10 = tpu.matmul %9, %5, %cst_6 {dimension_numbers = #tpu.dot_dimension_numbers<[2], [1], [1], [2], [0, 0, 0, 1, 1, 2], [0], [0]>} : vector<2x8x16xf32>, vector<2x16x8xf32>, vector<2x8x8xf32> -> vector<2x8x8xf32>
    "tpu.trace_stop"() : () -> ()
    %c0_7 = arith.constant 0 : index
    %c0_8 = arith.constant 0 : index
    %c0_9 = arith.constant 0 : index
    %11 = vector.load %arg4[%c0_7, %c0_8, %c0_9] : memref<2x8x8xf32, #tpu.memory_space<vmem>>, vector<2x8x8xf32>
    tpu.vector_store %arg4[%c0_7, %c0_8, %c0_9], %10 {strides = array<i32>} : memref<2x8x8xf32, #tpu.memory_space<vmem>>, vector<2x8x8xf32>,
    return
  }
  func.func @transform_0(%arg0: i32) -> (i32, i32, i32) {
    %c0_i32 = arith.constant 0 : i32
    %c0_i32_0 = arith.constant 0 : i32
    %c0_i32_1 = arith.constant 0 : i32
    return %arg0, %c0_i32, %c0_i32_0 : i32, i32, i32
  }
  func.func @transform_1(%arg0: i32) -> (i32, i32) {
    %c0_i32 = arith.constant 0 : i32
    %c0_i32_0 = arith.constant 0 : i32
    %c0_i32_1 = arith.constant 0 : i32
    return %c0_i32, %c0_i32_0 : i32, i32
  }
  func.func @transform_2(%arg0: i32) -> (i32, i32) {
    %c0_i32 = arith.constant 0 : i32
    %c0_i32_0 = arith.constant 0 : i32
    %c0_i32_1 = arith.constant 0 : i32
    return %c0_i32, %c0_i32_0 : i32, i32
  }
  func.func @transform_3(%arg0: i32) -> (i32, i32, i32) {
    %c0_i32 = arith.constant 0 : i32
    %c0_i32_0 = arith.constant 0 : i32
    %c0_i32_1 = arith.constant 0 : i32
    return %arg0, %c0_i32, %c0_i32_0 : i32, i32, i32
  }
}

module attributes {stable_mosaic.version = 11 : i64} {
  func.func @kernel(%arg0: i32, %arg1: memref<2x16x16xf32, #tpu.memory_space<vmem>>, %arg2: memref<8x16xf32, #tpu.memory_space<vmem>>, %arg3: memref<16x8xbf16, #tpu.memory_space<vmem>>, %arg4: memref<2x8x8xf32, #tpu.memory_space<vmem>>) attributes {dimension_semantics = [#tpu.dimension_semantics<parallel>], iteration_bounds = array<i64: 4>, scalar_prefetch = 0 : i64, scratch_operands = 0 : i64, tpu.core_type = #tpu.core_type<tc>, window_params = [{transform_indices = @transform_0, window_bounds = array<i64: 2, 16, 16>}, {pipeline_mode = #tpu.pipeline_mode<synchronous>, transform_indices = @transform_1, window_bounds = array<i64: 8, 16>}, {pipeline_mode = #tpu.pipeline_mode<synchronous>, transform_indices = @transform_2, window_bounds = array<i64: 16, 8>}, {transform_indices = @transform_3, window_bounds = array<i64: 2, 8, 8>}]} {
    %c0 = arith.constant 0 : index
    %c0_0 = arith.constant 0 : index
    %c0_1 = arith.constant 0 : index
    %0 = vector.load %arg1[%c0, %c0_0, %c0_1] : memref<2x16x16xf32, #tpu.memory_space<vmem>>, vector<2x16x16xf32>
    %1 = vector.shape_cast %0 : vector<2x16x16xf32> to vector<32x16xf32>
    %2 = arith.truncf %1 : vector<32x16xf32> to vector<32x16xbf16>
    %c0_2 = arith.constant 0 : index
    %c0_3 = arith.constant 0 : index
    %3 = vector.load %arg3[%c0_2, %c0_3] : memref<16x8xbf16, #tpu.memory_space<vmem>>, vector<16x8xbf16>
    %cst = arith.constant dense<0.000000e+00> : vector<32x8xf32>
    %4 = tpu.matmul %2, %3, %cst {dimension_numbers = #tpu.dot_dimension_numbers<[1], [0], [0], [1], [0, 0, 1, 1], [], []>} : vector<32x16xbf16>, vector<16x8xbf16>, vector<32x8xf32> -> vector<32x8xf32>
    %5 = vector.shape_cast %4 : vector<32x8xf32> to vector<2x16x8xf32>
    %c0_4 = arith.constant 0 : index
    %c0_5 = arith.constant 0 : index
    %6 = vector.load %arg2[%c0_4, %c0_5] : memref<8x16xf32, #tpu.memory_space<vmem>>, vector<8x16xf32>
    %7 = vector.shape_cast %6 : vector<8x16xf32> to vector<1x8x16xf32>
    %8 = vector.shape_cast %7 : vector<1x8x16xf32> to vector<1x8x16xf32>
    %9 = vector.broadcast %8 : vector<1x8x16xf32> to vector<2x8x16xf32>
    "tpu.trace_start"() <{level = 10 : i32, message = "boh,bhw->bow"}> : () -> ()
    %cst_6 = arith.constant dense<0.000000e+00> : vector<2x8x8xf32>
    %10 = tpu.matmul %9, %5, %cst_6 {dimension_numbers = #tpu.dot_dimension_numbers<[2], [1], [1], [2], [0, 0, 0, 1, 1, 2], [0], [0]>} : vector<2x8x16xf32>, vector<2x16x8xf32>, vector<2x8x8xf32> -> vector<2x8x8xf32>
    "tpu.trace_stop"() : () -> ()
    %c0_7 = arith.constant 0 : index
    %c0_8 = arith.constant 0 : index
    %c0_9 = arith.constant 0 : index
    %11 = vector.load %arg4[%c0_7, %c0_8, %c0_9] : memref<2x8x8xf32, #tpu.memory_space<vmem>>, vector<2x8x8xf32>
    tpu.vector_store %arg4[%c0_7, %c0_8, %c0_9], %10 {strides = array<i32>} : memref<2x8x8xf32, #tpu.memory_space<vmem>>, vector<2x8x8xf32>,
    return
  }
  func.func @transform_0(%arg0: i32) -> (i32, i32, i32) {
    %c0_i32 = arith.constant 0 : i32
    %c0_i32_0 = arith.constant 0 : i32
    %c0_i32_1 = arith.constant 0 : i32
    return %arg0, %c0_i32, %c0_i32_0 : i32, i32, i32
  }
  func.func @transform_1(%arg0: i32) -> (i32, i32) {
    %c0_i32 = arith.constant 0 : i32
    %c0_i32_0 = arith.constant 0 : i32
    %c0_i32_1 = arith.constant 0 : i32
    return %c0_i32, %c0_i32_0 : i32, i32
  }
  func.func @transform_2(%arg0: i32) -> (i32, i32) {
    %c0_i32 = arith.constant 0 : i32
    %c0_i32_0 = arith.constant 0 : i32
    %c0_i32_1 = arith.constant 0 : i32
    return %c0_i32, %c0_i32_0 : i32, i32
  }
  func.func @transform_3(%arg0: i32) -> (i32, i32, i32) {
    %c0_i32 = arith.constant 0 : i32
    %c0_i32_0 = arith.constant 0 : i32
    %c0_i32_1 = arith.constant 0 : i32
    return %arg0, %c0_i32, %c0_i32_0 : i32, i32, i32
  }
}

</mosaic_0001>

<llo_original>
// kernel: tpu_custom_call.1
$region0: #{tpu_custom_call.1}
  #allocation0 [shape = 'u32[]', space=smem, size = 0x4, offset = 0x4, fixed_abs, tag = 'smem constant byte address 0x4 - core index']
  #allocation1 [shape = 'u32[144,128]{1,0:T(1,128)}', space=vmem, size = 0x12000, scoped, tag = 'internal scratch']
  %s0 = inlined_call_operand.hbm [shape: f32[8,16,16], index: 0, kind: input, shape index: {}]
  %s1 = inlined_call_operand.vmem [shape: f32[8,16], index: 1, kind: input, shape index: {}]
  %s2 = inlined_call_operand.vmem [shape: bf16[16,8], index: 2, kind: input, shape index: {}]
  %s3 = inlined_call_operand.hbm [shape: f32[8,8,8], index: 3, kind: output, shape index: {}]
  %s4 = sld [smem:[#allocation0]]
  $region49: #{tpu_custom_call.1} parent=0
    _
  %s6 = ssub.s32 1, %s4
  %s7 = scalar_select 0, %s6, %s4
  $region1: #{tpu_custom_call.1} parent=0
    #allocation2 [shape = 'u8[32768]{0}', space=vmem, size = 0x8000, scoped, tag = 'input window, operand 0']
    #allocation3 [shape = 's32[2]{0}', space=sflag, size = 0x8, scoped, tag = 'scoped memory for tpu_custom_call.1']
    #allocation4 [shape = 's32[2]{0}', space=sflag, size = 0x8, scoped, tag = 'scoped memory for tpu_custom_call.1']
    #allocation5 [shape = 'u8[16384]{0}', space=vmem, size = 0x4000, scoped, tag = 'output window, operand 0']
    %8 = vsyncpa [#allocation3], 0
    %s9 = scalar_lea.sflag [#allocation3], 1
    %10 = vsyncpa %s9, 0
    %11 = vsyncpa [#allocation4], 0
    %s12 = scalar_lea.sflag [#allocation4], 1
    %13 = vsyncpa %s12, 0
    loop: start=0, step=1, limit=6
    $region2: #{tpu_custom_call.1} parent=1 // loop_pre_header
      _
    $region3: #{tpu_custom_call.1} parent=1 // loop_header
      %s15 = sphi 0, %s19
      %p16 = scmp.ge.s32.totalorder %s15, 6
      %s25 = sphi 0, %s27
      %s28 = sphi 0, %s25
      %s29 = sphi 0, %s28
      %s45 = sphi 0, %s29
      %s49 = sphi 0, %s49
      %s51 = sphi 0, %s49
      %s52 = sphi 0, %s51
      %s66 = sphi 0, %s52
      %s70 = sphi 0, %s70
      %s72 = sphi 0, %s70
      %s73 = sphi 0, %s72
      %s87 = sphi 0, %s73
      %s93 = sphi 0, %s95
      %s96 = sphi 0, %s93
      %s97 = sphi 0, %s96
      %s113 = sphi 0, %s97
    $region4: #{tpu_custom_call.1} parent=1 // loop_header_branch
      %18 = sbr.rel (%p16) target = $region8
    $region5: #{tpu_custom_call.1} parent=1 // loop_body
      %s20 = ssub.s32 %s15, 1
      %s21 = ssub.s32 %s15, 2
      %s22 = sadd.s32 %s15, 1
      %s23 = ssub.s32 %s15, %s22
      %p24 = scmp.eq.s32.totalorder %s23, 0
      %s26 = sadd.s32 %s25, 1
      %s27 = scalar_select %p24, %s25, %s26
      %p30 = pneg %p24
      %p31 = scmp.eq.s32.totalorder %s15, 3
      %p32 = por %p30, %p31
      %p33 = scmp.ne.s32.totalorder %s25, %s28
      %p34 = scmp.eq.s32.totalorder %s15, 0
      %p35 = por %p33, %p34
      %p36 = scmp.ne.s32.totalorder %s25, %s28
      %p37 = scmp.eq.s32.totalorder %s20, 3
      %p38 = por %p36, %p37
      %p39 = scmp.ne.s32.totalorder %s28, %s29
      %p40 = scmp.eq.s32.totalorder %s20, 0
      %p41 = por %p39, %p40
      %p42 = scmp.ne.s32.totalorder %s28, %s29
      %p43 = scmp.eq.s32.totalorder %s21, 3
      %p44 = por %p42, %p43
      %p46 = scmp.ne.s32.totalorder %s29, %s45
      %p47 = scmp.eq.s32.totalorder %s21, 0
      %p48 = por %p46, %p47
      %s50 = sadd.s32 %s49, 1
      %p53 = scmp.eq.s32.totalorder %s15, 3
      %p54 = scmp.ne.s32.totalorder %s49, %s51
      %p55 = scmp.eq.s32.totalorder %s15, 0
      %p56 = por %p54, %p55
      %p57 = scmp.ne.s32.totalorder %s49, %s51
      %p58 = scmp.eq.s32.totalorder %s20, 3
      %p59 = por %p57, %p58
      %p60 = scmp.ne.s32.totalorder %s51, %s52
      %p61 = scmp.eq.s32.totalorder %s20, 0
      %p62 = por %p60, %p61
      %p63 = scmp.ne.s32.totalorder %s51, %s52
      %p64 = scmp.eq.s32.totalorder %s21, 3
      %p65 = por %p63, %p64
      %p67 = scmp.ne.s32.totalorder %s52, %s66
      %p68 = scmp.eq.s32.totalorder %s21, 0
      %p69 = por %p67, %p68
      %s71 = sadd.s32 %s70, 1
      %p74 = scmp.eq.s32.totalorder %s15, 3
      %p75 = scmp.ne.s32.totalorder %s70, %s72
      %p76 = scmp.eq.s32.totalorder %s15, 0
      %p77 = por %p75, %p76
      %p78 = scmp.ne.s32.totalorder %s70, %s72
      %p79 = scmp.eq.s32.totalorder %s20, 3
      %p80 = por %p78, %p79
      %p81 = scmp.ne.s32.totalorder %s72, %s73
      %p82 = scmp.eq.s32.totalorder %s20, 0
      %p83 = por %p81, %p82
      %p84 = scmp.ne.s32.totalorder %s72, %s73
      %p85 = scmp.eq.s32.totalorder %s21, 3
      %p86 = por %p84, %p85
      %p88 = scmp.ne.s32.totalorder %s73, %s87
      %p89 = scmp.eq.s32.totalorder %s21, 0
      %p90 = por %p88, %p89
      %s91 = ssub.s32 %s15, %s22
      %p92 = scmp.eq.s32.totalorder %s91, 0
      %s94 = sadd.s32 %s93, 1
      %s95 = scalar_select %p92, %s93, %s94
      %p98 = pneg %p92
      %p99 = scmp.eq.s32.totalorder %s15, 3
      %p100 = por %p98, %p99
      %p101 = scmp.ne.s32.totalorder %s93, %s96
      %p102 = scmp.eq.s32.totalorder %s15, 0
      %p103 = por %p101, %p102
      %p104 = scmp.ne.s32.totalorder %s93, %s96
      %p105 = scmp.eq.s32.totalorder %s20, 3
      %p106 = por %p104, %p105
      %p107 = scmp.ne.s32.totalorder %s96, %s97
      %p108 = scmp.eq.s32.totalorder %s20, 0
      %p109 = por %p107, %p108
      %p110 = scmp.ne.s32.totalorder %s96, %s97
      %p111 = scmp.eq.s32.totalorder %s21, 3
      %p112 = por %p110, %p111
      %p114 = scmp.ne.s32.totalorder %s97, %s113
      %p115 = scmp.eq.s32.totalorder %s21, 0
      %p116 = por %p114, %p115
      %p117 = scmp.le.s32.totalorder 1, %s15
      %p118 = scmp.lt.s32.totalorder %s15, 5
      %p119 = pnand %p117, %p118
      %p120 = pneg %p119
      // Predicated region
      $region9: #{tpu_custom_call.1} parent=5 // pred_check
        _
      $region10: #{tpu_custom_call.1} parent=5 // pred_check_branch
        %122 = sbr.rel (%p119) target = $region12
      $region11: #{tpu_custom_call.1} parent=5 // pred_region
        %s123 = ssub.s32 %s15, 1
        // Predicated region
        $region13: #{tpu_custom_call.1} parent=11 // pred_check
          %p124 = pneg %p62
        $region14: #{tpu_custom_call.1} parent=11 // pred_check_branch
          %126 = sbr.rel (%p124) target = $region16
        $region15: #{tpu_custom_call.1} parent=11 // pred_region
          _
        $region16: #{tpu_custom_call.1} parent=11 // pred_fallthru
          _
        // Predicated region
        $region17: #{tpu_custom_call.1} parent=11 // pred_check
          %p127 = pneg %p83
        $region18: #{tpu_custom_call.1} parent=11 // pred_check_branch
          %129 = sbr.rel (%p127) target = $region20
        $region19: #{tpu_custom_call.1} parent=11 // pred_region
          _
        $region20: #{tpu_custom_call.1} parent=11 // pred_fallthru
          _
      $region12: #{tpu_custom_call.1} parent=5 // pred_fallthru
        _
      %p130 = scmp.lt.s32.totalorder %s15, 4
      // Predicated region
      $region21: #{tpu_custom_call.1} parent=5 // pred_check
        %p131 = pneg %p130
      $region22: #{tpu_custom_call.1} parent=5 // pred_check_branch
        %133 = sbr.rel (%p131) target = $region24
      $region23: #{tpu_custom_call.1} parent=5 // pred_region
        // Predicated region
        $region25: #{tpu_custom_call.1} parent=23 // pred_check
          %p134 = pneg %p35
        $region26: #{tpu_custom_call.1} parent=23 // pred_check_branch
          %136 = sbr.rel (%p134) target = $region28
        $region27: #{tpu_custom_call.1} parent=23 // pred_region
          %s137 = sand.u32 %s25, 1
          %s138 = scalar_lea.sflag [#allocation3], %s137
          %s139 = sand.u32 %s25, 1
          %s140 = smul.addr %s139, 32
          %s141 = scalar_lea.vmem [#allocation2], %s140
          %s142 = smul.u32 2, %s15
          %s144 = ssub.s32 512, 512
          %145 = vsyncadd %s138, %s144
          %s146 = smul.addr %s142, 2
          %s147 = smul.addr %s146, 128
          %s148 = scalar_lea.hbm %s0, %s147
          %s149 = sshll.u32 %s141, 4
          %s150 = int_to_ptr.vmem [resolvable:$true] %s149
          %155 = dma.hbm_to_vmem [thread:$0]  %s148, 512, %s150, %s138, 128, 128, 8
        $region28: #{tpu_custom_call.1} parent=23 // pred_fallthru
          _
      $region24: #{tpu_custom_call.1} parent=5 // pred_fallthru
        _
      %p156 = scmp.le.s32.totalorder 1, %s15
      %p157 = scmp.lt.s32.totalorder %s15, 5
      %p158 = pnand %p156, %p157
      %p159 = pneg %p158
      // Predicated region
      $region29: #{tpu_custom_call.1} parent=5 // pred_check
        _
      $region30: #{tpu_custom_call.1} parent=5 // pred_check_branch
        %161 = sbr.rel (%p158) target = $region32
      $region31: #{tpu_custom_call.1} parent=5 // pred_region
        %s162 = ssub.s32 %s15, 1
        %s163 = sand.u32 %s28, 1
        %s164 = scalar_lea.sflag [#allocation3], %s163
        %s165 = sand.u32 %s28, 1
        %s166 = smul.addr %s165, 32
        %s167 = scalar_lea.vmem [#allocation2], %s166
        // Predicated region
        $region33: #{tpu_custom_call.1} parent=31 // pred_check
          %p168 = pneg %p41
        $region34: #{tpu_custom_call.1} parent=31 // pred_check_branch
          %170 = sbr.rel (%p168) target = $region36
        $region35: #{tpu_custom_call.1} parent=31 // pred_region
          %171 = dma.done %s164, 512
        $region36: #{tpu_custom_call.1} parent=31 // pred_fallthru
          _
        %s172 = sand.u32 %s28, 1
        %s173 = scalar_lea.sflag [#allocation3], %s172
        %s174 = sand.u32 %s28, 1
        %s175 = smul.addr %s174, 32
        %s176 = scalar_lea.vmem [#allocation2], %s175
        %p177 = pneg %p41
        %p178 = pneg %p38
        %p179 = pneg %p62
        %p180 = pneg %p59
        %p181 = pneg %p83
        %p182 = pneg %p80
        %p183 = pneg %p109
        %p184 = pneg %p106
        %s185 = sand.u32 %s96, 1
        %s186 = scalar_lea.sflag [#allocation4], %s185
        %s187 = sand.u32 %s96, 1
        %s188 = smul.addr %s187, 16
        %s189 = scalar_lea.vmem [#allocation5], %s188
        %s190 = smul.u32 2, %s20
        %s191 = smul.u32 2, %s20
        %v193 = vld [vmem:[%s167] sm:$0xff]
        %v194 = vld [vmem:[%s167 + $0x8] sm:$0xff]
        %v195 = vld [vmem:[%s167 + $0x10] sm:$0xff]
        %v196 = vld [vmem:[%s167 + $0x18] sm:$0xff]
        %v197 = vpack.c.bf16 %v194, %v193
        %v198 = vpack.c.bf16 %v196, %v195
        %v199 = vld [vmem:[%s2] sm:$0xf]
        %v200 = vld [vmem:[%s2 + $0x4] sm:$0xf]
        %v203 = vunpack.c.l.b16 %v199
        %v204 = vunpack.c.l.b16 %v200
        %v205 = vpack.c.b16 %v204, %v203
        %vm207 = vcmask 130048
        %v209 = vsel %vm207, %v197, 0
        %v212 = vsel %vm207, %v198, 0
        %214 = vmatprep.subr.bf16.mxu0 0
        %215 = vmatpush1.bf16.msra.mxu0 %v205
        %216 = vmatprep.subr.bf16.mxu0 0
        %217 = vmatpush1.bf16.msra.mxu0 0
        %218 = vmatprep.subr.bf16.mxu0 0
        %219 = vmatpush1.bf16.msra.mxu0 0
        %220 = vmatprep.subr.bf16.mxu0 0
        %221 = vmatpush1.bf16.msra.mxu0 0
        %222 = vmatprep.subr.bf16.mxu0 0
        %223 = vmatpush1.bf16.msra.mxu0 0
        %224 = vmatprep.subr.bf16.mxu0 0
        %225 = vmatpush1.bf16.msra.mxu0 0
        %226 = vmatprep.subr.bf16.mxu0 0
        %227 = vmatpush1.bf16.msra.mxu0 0
        %228 = vmatprep.subr.bf16.mxu0 0
        %229 = vmatpush1.bf16.msra.mxu0 0
        %230 = vmatprep.subr.bf16.mxu0 0
        %231 = vmatpush1.bf16.msra.mxu0 0
        %232 = vmatprep.subr.bf16.mxu0 0
        %233 = vmatpush1.bf16.msra.mxu0 0
        %234 = vmatprep.subr.bf16.mxu0 0
        %235 = vmatpush1.bf16.msra.mxu0 0
        %236 = vmatprep.subr.bf16.mxu0 0
        %237 = vmatpush1.bf16.msra.mxu0 0
        %238 = vmatprep.subr.bf16.mxu0 0
        %239 = vmatpush1.bf16.msra.mxu0 0
        %240 = vmatprep.subr.bf16.mxu0 0
        %241 = vmatpush1.bf16.msra.mxu0 0
        %242 = vmatprep.subr.bf16.mxu0 0
        %243 = vmatpush1.bf16.msra.mxu0 0
        %244 = vmatprep.subr.bf16.mxu0 0
        %245 = vmatpush1.bf16.msra.mxu0 0
        %246 = vmatprep.mubr.bf16.mxu0 0
        %247 = vmatmul.mubr.bf16.gmra.mrb[0].mxu0 %v209
        %v248 = vpop.f32.mrb[0].mxu0
        %v249 = vadd.f32 0.0, %v248
        %v250 = vpop.f32.mrb[0].mxu0
        %v251 = vpop.f32.mrb[0].mxu0
        %v252 = vadd.f32 0.0, %v251
        %v253 = vpop.f32.mrb[0].mxu0
        %254 = vmatprep.mubr.bf16.mxu0 0
        %255 = vmatmul.mubr.bf16.gmra.mrb[0].mxu0 %v212
        %v256 = vpop.f32.mrb[0].mxu0
        %v257 = vadd.f32 0.0, %v256
        %v258 = vpop.f32.mrb[0].mxu0
        %v259 = vpop.f32.mrb[0].mxu0
        %v260 = vadd.f32 0.0, %v259
        %v261 = vpop.f32.mrb[0].mxu0
        %262 = vdwg.mxu0
        %v263 = vld [vmem:[%s1] sm:$0xff]
        %v265 = vsel %vm207, %v263, 0
        %267 = vmatprep.subr.mxu0 0.0
        %268 = vmatpush1.msra.mxu0 %v249
        %269 = vmatprep.subr.mxu0 0.0
        %270 = vmatpush1.msra.mxu0 %v252
        %271 = vmatprep.subr.mxu0 0.0
        %272 = vmatpush1.msra.mxu0 0.0
        %273 = vmatprep.subr.mxu0 0.0
        %274 = vmatpush1.msra.mxu0 0.0
        %275 = vmatprep.subr.mxu0 0.0
        %276 = vmatpush1.msra.mxu0 0.0
        %277 = vmatprep.subr.mxu0 0.0
        %278 = vmatpush1.msra.mxu0 0.0
        %279 = vmatprep.subr.mxu0 0.0
        %280 = vmatpush1.msra.mxu0 0.0
        %281 = vmatprep.subr.mxu0 0.0
        %282 = vmatpush1.msra.mxu0 0.0
        %283 = vmatprep.subr.mxu0 0.0
        %284 = vmatpush1.msra.mxu0 0.0
        %285 = vmatprep.subr.mxu0 0.0
        %286 = vmatpush1.msra.mxu0 0.0
        %287 = vmatprep.subr.mxu0 0.0
        %288 = vmatpush1.msra.mxu0 0.0
        %289 = vmatprep.subr.mxu0 0.0
        %290 = vmatpush1.msra.mxu0 0.0
        %291 = vmatprep.subr.mxu0 0.0
        %292 = vmatpush1.msra.mxu0 0.0
        %293 = vmatprep.subr.mxu0 0.0
        %294 = vmatpush1.msra.mxu0 0.0
        %295 = vmatprep.subr.mxu0 0.0
        %296 = vmatpush1.msra.mxu0 0.0
        %297 = vmatprep.subr.mxu0 0.0
        %298 = vmatpush1.msra.mxu0 0.0
        %299 = vmatprep.subr.mxu0 0.0
        %300 = vmatpush1.msra.mxu0 0.0
        %301 = vmatprep.subr.mxu0 0.0
        %302 = vmatpush1.msra.mxu0 0.0
        %303 = vmatprep.subr.mxu0 0.0
        %304 = vmatpush1.msra.mxu0 0.0
        %305 = vmatprep.subr.mxu0 0.0
        %306 = vmatpush1.msra.mxu0 0.0
        %307 = vmatprep.subr.mxu0 0.0
        %308 = vmatpush1.msra.mxu0 0.0
        %309 = vmatprep.subr.mxu0 0.0
        %310 = vmatpush1.msra.mxu0 0.0
        %311 = vmatprep.subr.mxu0 0.0
        %312 = vmatpush1.msra.mxu0 0.0
        %313 = vmatprep.subr.mxu0 0.0
        %314 = vmatpush1.msra.mxu0 0.0
        %315 = vmatprep.subr.mxu0 0.0
        %316 = vmatpush1.msra.mxu0 0.0
        %317 = vmatprep.subr.mxu0 0.0
        %318 = vmatpush1.msra.mxu0 0.0
        %319 = vmatprep.subr.mxu0 0.0
        %320 = vmatpush1.msra.mxu0 0.0
        %321 = vmatprep.subr.mxu0 0.0
        %322 = vmatpush1.msra.mxu0 0.0
        %323 = vmatprep.subr.mxu0 0.0
        %324 = vmatpush1.msra.mxu0 0.0
        %325 = vmatprep.subr.mxu0 0.0
        %326 = vmatpush1.msra.mxu0 0.0
        %327 = vmatprep.subr.mxu0 0.0
        %328 = vmatpush1.msra.mxu0 0.0
        %329 = vmatprep.subr.mxu0 0.0
        %330 = vmatpush1.msra.mxu0 0.0
        %331 = vmatprep.mubr.f32.mxu0 0.0
        %332 = vmatmul.mubr.f32.gmra.mrb[0].mxu0 %v265
        %v333 = vpop.f32.mrb[0].mxu0
        %v334 = vadd.f32 0.0, %v333
        %v335 = vpop.f32.mrb[0].mxu0
        %336 = vdwg.mxu0
        %337 = vmatprep.subr.mxu0 0.0
        %338 = vmatpush1.msra.mxu0 %v257
        %339 = vmatprep.subr.mxu0 0.0
        %340 = vmatpush1.msra.mxu0 %v260
        %341 = vmatprep.subr.mxu0 0.0
        %342 = vmatpush1.msra.mxu0 0.0
        %343 = vmatprep.subr.mxu0 0.0
        %344 = vmatpush1.msra.mxu0 0.0
        %345 = vmatprep.subr.mxu0 0.0
        %346 = vmatpush1.msra.mxu0 0.0
        %347 = vmatprep.subr.mxu0 0.0
        %348 = vmatpush1.msra.mxu0 0.0
        %349 = vmatprep.subr.mxu0 0.0
        %350 = vmatpush1.msra.mxu0 0.0
        %351 = vmatprep.subr.mxu0 0.0
        %352 = vmatpush1.msra.mxu0 0.0
        %353 = vmatprep.subr.mxu0 0.0
        %354 = vmatpush1.msra.mxu0 0.0
        %355 = vmatprep.subr.mxu0 0.0
        %356 = vmatpush1.msra.mxu0 0.0
        %357 = vmatprep.subr.mxu0 0.0
        %358 = vmatpush1.msra.mxu0 0.0
        %359 = vmatprep.subr.mxu0 0.0
        %360 = vmatpush1.msra.mxu0 0.0
        %361 = vmatprep.subr.mxu0 0.0
        %362 = vmatpush1.msra.mxu0 0.0
        %363 = vmatprep.subr.mxu0 0.0
        %364 = vmatpush1.msra.mxu0 0.0
        %365 = vmatprep.subr.mxu0 0.0
        %366 = vmatpush1.msra.mxu0 0.0
        %367 = vmatprep.subr.mxu0 0.0
        %368 = vmatpush1.msra.mxu0 0.0
        %369 = vmatprep.subr.mxu0 0.0
        %370 = vmatpush1.msra.mxu0 0.0
        %371 = vmatprep.subr.mxu0 0.0
        %372 = vmatpush1.msra.mxu0 0.0
        %373 = vmatprep.subr.mxu0 0.0
        %374 = vmatpush1.msra.mxu0 0.0
        %375 = vmatprep.subr.mxu0 0.0
        %376 = vmatpush1.msra.mxu0 0.0
        %377 = vmatprep.subr.mxu0 0.0
        %378 = vmatpush1.msra.mxu0 0.0
        %379 = vmatprep.subr.mxu0 0.0
        %380 = vmatpush1.msra.mxu0 0.0
        %381 = vmatprep.subr.mxu0 0.0
        %382 = vmatpush1.msra.mxu0 0.0
        %383 = vmatprep.subr.mxu0 0.0
        %384 = vmatpush1.msra.mxu0 0.0
        %385 = vmatprep.subr.mxu0 0.0
        %386 = vmatpush1.msra.mxu0 0.0
        %387 = vmatprep.subr.mxu0 0.0
        %388 = vmatpush1.msra.mxu0 0.0
        %389 = vmatprep.subr.mxu0 0.0
        %390 = vmatpush1.msra.mxu0 0.0
        %391 = vmatprep.subr.mxu0 0.0
        %392 = vmatpush1.msra.mxu0 0.0
        %393 = vmatprep.subr.mxu0 0.0
        %394 = vmatpush1.msra.mxu0 0.0
        %395 = vmatprep.subr.mxu0 0.0
        %396 = vmatpush1.msra.mxu0 0.0
        %397 = vmatprep.subr.mxu0 0.0
        %398 = vmatpush1.msra.mxu0 0.0
        %399 = vmatprep.subr.mxu0 0.0
        %400 = vmatpush1.msra.mxu0 0.0
        %401 = vmatprep.mubr.f32.mxu0 0.0
        %402 = vmatmul.mubr.f32.gmra.mrb[0].mxu0 %v265
        %v403 = vpop.f32.mrb[0].mxu0
        %v404 = vadd.f32 0.0, %v403
        %v405 = vpop.f32.mrb[0].mxu0
        %406 = vdwg.mxu0
        %vm407 = vcmask 64512
        %408 = vst.msk [vmem:[%s189] sm:$0xff] %vm407, %v334
        %409 = vst.msk [vmem:[%s189 + $0x8] sm:$0xff] %vm407, %v404
        %s410 = sand.u32 %s96, 1
        %s411 = scalar_lea.sflag [#allocation4], %s410
        %s412 = sand.u32 %s96, 1
        %s413 = smul.addr %s412, 16
        %s414 = scalar_lea.vmem [#allocation5], %s413
        // Predicated region
        $region37: #{tpu_custom_call.1} parent=31 // pred_check
          %p415 = pneg %p106
        $region38: #{tpu_custom_call.1} parent=31 // pred_check_branch
          %417 = sbr.rel (%p415) target = $region40
        $region39: #{tpu_custom_call.1} parent=31 // pred_region
          %s418 = smul.u32 2, %s20
          %s420 = ssub.s32 256, 256
          %421 = vsyncadd %s411, %s420
          %s422 = smul.addr %s418, 128
          %s423 = scalar_lea.hbm %s3, %s422
          %s424 = sshll.u32 %s414, 4
          %s425 = int_to_ptr.vmem [resolvable:$true] %s424
          %430 = dma.vmem_to_hbm [thread:$0]  %s425, 256, %s423, %s411, 128, 128, 8
        $region40: #{tpu_custom_call.1} parent=31 // pred_fallthru
          _
      $region32: #{tpu_custom_call.1} parent=5 // pred_fallthru
        _
      %p431 = scmp.le.s32.totalorder 2, %s15
      // Predicated region
      $region41: #{tpu_custom_call.1} parent=5 // pred_check
        %p432 = pneg %p431
      $region42: #{tpu_custom_call.1} parent=5 // pred_check_branch
        %434 = sbr.rel (%p432) target = $region44
      $region43: #{tpu_custom_call.1} parent=5 // pred_region
        %s435 = ssub.s32 %s15, 2
        // Predicated region
        $region45: #{tpu_custom_call.1} parent=43 // pred_check
          %p436 = pneg %p112
        $region46: #{tpu_custom_call.1} parent=43 // pred_check_branch
          %438 = sbr.rel (%p436) target = $region48
        $region47: #{tpu_custom_call.1} parent=43 // pred_region
          %s439 = sand.u32 %s97, 1
          %s440 = scalar_lea.sflag [#allocation4], %s439
          %s441 = sand.u32 %s97, 1
          %s442 = smul.addr %s441, 16
          %s443 = scalar_lea.vmem [#allocation5], %s442
          %444 = dma.done %s440, 256
        $region48: #{tpu_custom_call.1} parent=43 // pred_fallthru
          _
      $region44: #{tpu_custom_call.1} parent=5 // pred_fallthru
        _
    $region6: #{tpu_custom_call.1} parent=1 // loop_footer
      %s19 = sadd.s32 1, %s15
    $region7: #{tpu_custom_call.1} parent=1 // loop_footer_branch
      %14 = sbr.rel target = $region3
    $region8: #{tpu_custom_call.1} parent=1 // loop_exit
      _
    %445 = vsyncpa [#allocation3], 1
    %s446 = scalar_lea.sflag [#allocation3], 1
    %447 = vsyncpa %s446, 1
    %448 = vsyncpa [#allocation4], 1
    %s449 = scalar_lea.sflag [#allocation4], 1
    %450 = vsyncpa %s449, 1

// kernel: tpu_custom_call.1
$region0: #{tpu_custom_call.1}
  #allocation0 [shape = 'u32[]', space=smem, size = 0x4, offset = 0x4, fixed_abs, tag = 'smem constant byte address 0x4 - core index']
  #allocation1 [shape = 'u32[144,128]{1,0:T(1,128)}', space=vmem, size = 0x12000, scoped, tag = 'internal scratch']
  %s0 = inlined_call_operand.hbm [shape: f32[8,16,16], index: 0, kind: input, shape index: {}]
  %s1 = inlined_call_operand.vmem [shape: f32[8,16], index: 1, kind: input, shape index: {}]
  %s2 = inlined_call_operand.vmem [shape: bf16[16,8], index: 2, kind: input, shape index: {}]
  %s3 = inlined_call_operand.hbm [shape: f32[8,8,8], index: 3, kind: output, shape index: {}]
  %s4 = sld [smem:[#allocation0]]
  $region49: #{tpu_custom_call.1} parent=0
    _
  %s6 = ssub.s32 1, %s4
  %s7 = scalar_select 0, %s6, %s4
  $region1: #{tpu_custom_call.1} parent=0
    #allocation2 [shape = 'u8[32768]{0}', space=vmem, size = 0x8000, scoped, tag = 'input window, operand 0']
    #allocation3 [shape = 's32[2]{0}', space=sflag, size = 0x8, scoped, tag = 'scoped memory for tpu_custom_call.1']
    #allocation4 [shape = 's32[2]{0}', space=sflag, size = 0x8, scoped, tag = 'scoped memory for tpu_custom_call.1']
    #allocation5 [shape = 'u8[16384]{0}', space=vmem, size = 0x4000, scoped, tag = 'output window, operand 0']
    %8 = vsyncpa [#allocation3], 0
    %s9 = scalar_lea.sflag [#allocation3], 1
    %10 = vsyncpa %s9, 0
    %11 = vsyncpa [#allocation4], 0
    %s12 = scalar_lea.sflag [#allocation4], 1
    %13 = vsyncpa %s12, 0
    loop: start=0, step=1, limit=6
    $region2: #{tpu_custom_call.1} parent=1 // loop_pre_header
      _
    $region3: #{tpu_custom_call.1} parent=1 // loop_header
      %s15 = sphi 0, %s19
      %p16 = scmp.ge.s32.totalorder %s15, 6
      %s25 = sphi 0, %s27
      %s28 = sphi 0, %s25
      %s29 = sphi 0, %s28
      %s45 = sphi 0, %s29
      %s49 = sphi 0, %s49
      %s51 = sphi 0, %s49
      %s52 = sphi 0, %s51
      %s66 = sphi 0, %s52
      %s70 = sphi 0, %s70
      %s72 = sphi 0, %s70
      %s73 = sphi 0, %s72
      %s87 = sphi 0, %s73
      %s93 = sphi 0, %s95
      %s96 = sphi 0, %s93
      %s97 = sphi 0, %s96
      %s113 = sphi 0, %s97
    $region4: #{tpu_custom_call.1} parent=1 // loop_header_branch
      %18 = sbr.rel (%p16) target = $region8
    $region5: #{tpu_custom_call.1} parent=1 // loop_body
      %s20 = ssub.s32 %s15, 1
      %s21 = ssub.s32 %s15, 2
      %s22 = sadd.s32 %s15, 1
      %s23 = ssub.s32 %s15, %s22
      %p24 = scmp.eq.s32.totalorder %s23, 0
      %s26 = sadd.s32 %s25, 1
      %s27 = scalar_select %p24, %s25, %s26
      %p30 = pneg %p24
      %p31 = scmp.eq.s32.totalorder %s15, 3
      %p32 = por %p30, %p31
      %p33 = scmp.ne.s32.totalorder %s25, %s28
      %p34 = scmp.eq.s32.totalorder %s15, 0
      %p35 = por %p33, %p34
      %p36 = scmp.ne.s32.totalorder %s25, %s28
      %p37 = scmp.eq.s32.totalorder %s20, 3
      %p38 = por %p36, %p37
      %p39 = scmp.ne.s32.totalorder %s28, %s29
      %p40 = scmp.eq.s32.totalorder %s20, 0
      %p41 = por %p39, %p40
      %p42 = scmp.ne.s32.totalorder %s28, %s29
      %p43 = scmp.eq.s32.totalorder %s21, 3
      %p44 = por %p42, %p43
      %p46 = scmp.ne.s32.totalorder %s29, %s45
      %p47 = scmp.eq.s32.totalorder %s21, 0
      %p48 = por %p46, %p47
      %s50 = sadd.s32 %s49, 1
      %p53 = scmp.eq.s32.totalorder %s15, 3
      %p54 = scmp.ne.s32.totalorder %s49, %s51
      %p55 = scmp.eq.s32.totalorder %s15, 0
      %p56 = por %p54, %p55
      %p57 = scmp.ne.s32.totalorder %s49, %s51
      %p58 = scmp.eq.s32.totalorder %s20, 3
      %p59 = por %p57, %p58
      %p60 = scmp.ne.s32.totalorder %s51, %s52
      %p61 = scmp.eq.s32.totalorder %s20, 0
      %p62 = por %p60, %p61
      %p63 = scmp.ne.s32.totalorder %s51, %s52
      %p64 = scmp.eq.s32.totalorder %s21, 3
      %p65 = por %p63, %p64
      %p67 = scmp.ne.s32.totalorder %s52, %s66
      %p68 = scmp.eq.s32.totalorder %s21, 0
      %p69 = por %p67, %p68
      %s71 = sadd.s32 %s70, 1
      %p74 = scmp.eq.s32.totalorder %s15, 3
      %p75 = scmp.ne.s32.totalorder %s70, %s72
      %p76 = scmp.eq.s32.totalorder %s15, 0
      %p77 = por %p75, %p76
      %p78 = scmp.ne.s32.totalorder %s70, %s72
      %p79 = scmp.eq.s32.totalorder %s20, 3
      %p80 = por %p78, %p79
      %p81 = scmp.ne.s32.totalorder %s72, %s73
      %p82 = scmp.eq.s32.totalorder %s20, 0
      %p83 = por %p81, %p82
      %p84 = scmp.ne.s32.totalorder %s72, %s73
      %p85 = scmp.eq.s32.totalorder %s21, 3
      %p86 = por %p84, %p85
      %p88 = scmp.ne.s32.totalorder %s73, %s87
      %p89 = scmp.eq.s32.totalorder %s21, 0
      %p90 = por %p88, %p89
      %s91 = ssub.s32 %s15, %s22
      %p92 = scmp.eq.s32.totalorder %s91, 0
      %s94 = sadd.s32 %s93, 1
      %s95 = scalar_select %p92, %s93, %s94
      %p98 = pneg %p92
      %p99 = scmp.eq.s32.totalorder %s15, 3
      %p100 = por %p98, %p99
      %p101 = scmp.ne.s32.totalorder %s93, %s96
      %p102 = scmp.eq.s32.totalorder %s15, 0
      %p103 = por %p101, %p102
      %p104 = scmp.ne.s32.totalorder %s93, %s96
      %p105 = scmp.eq.s32.totalorder %s20, 3
      %p106 = por %p104, %p105
      %p107 = scmp.ne.s32.totalorder %s96, %s97
      %p108 = scmp.eq.s32.totalorder %s20, 0
      %p109 = por %p107, %p108
      %p110 = scmp.ne.s32.totalorder %s96, %s97
      %p111 = scmp.eq.s32.totalorder %s21, 3
      %p112 = por %p110, %p111
      %p114 = scmp.ne.s32.totalorder %s97, %s113
      %p115 = scmp.eq.s32.totalorder %s21, 0
      %p116 = por %p114, %p115
      %p117 = scmp.le.s32.totalorder 1, %s15
      %p118 = scmp.lt.s32.totalorder %s15, 5
      %p119 = pnand %p117, %p118
      %p120 = pneg %p119
      // Predicated region
      $region9: #{tpu_custom_call.1} parent=5 // pred_check
        _
      $region10: #{tpu_custom_call.1} parent=5 // pred_check_branch
        %122 = sbr.rel (%p119) target = $region12
      $region11: #{tpu_custom_call.1} parent=5 // pred_region
        %s123 = ssub.s32 %s15, 1
        // Predicated region
        $region13: #{tpu_custom_call.1} parent=11 // pred_check
          %p124 = pneg %p62
        $region14: #{tpu_custom_call.1} parent=11 // pred_check_branch
          %126 = sbr.rel (%p124) target = $region16
        $region15: #{tpu_custom_call.1} parent=11 // pred_region
          _
        $region16: #{tpu_custom_call.1} parent=11 // pred_fallthru
          _
        // Predicated region
        $region17: #{tpu_custom_call.1} parent=11 // pred_check
          %p127 = pneg %p83
        $region18: #{tpu_custom_call.1} parent=11 // pred_check_branch
          %129 = sbr.rel (%p127) target = $region20
        $region19: #{tpu_custom_call.1} parent=11 // pred_region
          _
        $region20: #{tpu_custom_call.1} parent=11 // pred_fallthru
          _
      $region12: #{tpu_custom_call.1} parent=5 // pred_fallthru
        _
      %p130 = scmp.lt.s32.totalorder %s15, 4
      // Predicated region
      $region21: #{tpu_custom_call.1} parent=5 // pred_check
        %p131 = pneg %p130
      $region22: #{tpu_custom_call.1} parent=5 // pred_check_branch
        %133 = sbr.rel (%p131) target = $region24
      $region23: #{tpu_custom_call.1} parent=5 // pred_region
        // Predicated region
        $region25: #{tpu_custom_call.1} parent=23 // pred_check
          %p134 = pneg %p35
        $region26: #{tpu_custom_call.1} parent=23 // pred_check_branch
          %136 = sbr.rel (%p134) target = $region28
        $region27: #{tpu_custom_call.1} parent=23 // pred_region
          %s137 = sand.u32 %s25, 1
          %s138 = scalar_lea.sflag [#allocation3], %s137
          %s139 = sand.u32 %s25, 1
          %s140 = smul.addr %s139, 32
          %s141 = scalar_lea.vmem [#allocation2], %s140
          %s142 = smul.u32 2, %s15
          %s144 = ssub.s32 512, 512
          %145 = vsyncadd %s138, %s144
          %s146 = smul.addr %s142, 2
          %s147 = smul.addr %s146, 128
          %s148 = scalar_lea.hbm %s0, %s147
          %s149 = sshll.u32 %s141, 4
          %s150 = int_to_ptr.vmem [resolvable:$true] %s149
          %155 = dma.hbm_to_vmem [thread:$0]  %s148, 512, %s150, %s138, 128, 128, 8
        $region28: #{tpu_custom_call.1} parent=23 // pred_fallthru
          _
      $region24: #{tpu_custom_call.1} parent=5 // pred_fallthru
        _
      %p156 = scmp.le.s32.totalorder 1, %s15
      %p157 = scmp.lt.s32.totalorder %s15, 5
      %p158 = pnand %p156, %p157
      %p159 = pneg %p158
      // Predicated region
      $region29: #{tpu_custom_call.1} parent=5 // pred_check
        _
      $region30: #{tpu_custom_call.1} parent=5 // pred_check_branch
        %161 = sbr.rel (%p158) target = $region32
      $region31: #{tpu_custom_call.1} parent=5 // pred_region
        %s162 = ssub.s32 %s15, 1
        %s163 = sand.u32 %s28, 1
        %s164 = scalar_lea.sflag [#allocation3], %s163
        %s165 = sand.u32 %s28, 1
        %s166 = smul.addr %s165, 32
        %s167 = scalar_lea.vmem [#allocation2], %s166
        // Predicated region
        $region33: #{tpu_custom_call.1} parent=31 // pred_check
          %p168 = pneg %p41
        $region34: #{tpu_custom_call.1} parent=31 // pred_check_branch
          %170 = sbr.rel (%p168) target = $region36
        $region35: #{tpu_custom_call.1} parent=31 // pred_region
          %171 = dma.done %s164, 512
        $region36: #{tpu_custom_call.1} parent=31 // pred_fallthru
          _
        %s172 = sand.u32 %s28, 1
        %s173 = scalar_lea.sflag [#allocation3], %s172
        %s174 = sand.u32 %s28, 1
        %s175 = smul.addr %s174, 32
        %s176 = scalar_lea.vmem [#allocation2], %s175
        %p177 = pneg %p41
        %p178 = pneg %p38
        %p179 = pneg %p62
        %p180 = pneg %p59
        %p181 = pneg %p83
        %p182 = pneg %p80
        %p183 = pneg %p109
        %p184 = pneg %p106
        %s185 = sand.u32 %s96, 1
        %s186 = scalar_lea.sflag [#allocation4], %s185
        %s187 = sand.u32 %s96, 1
        %s188 = smul.addr %s187, 16
        %s189 = scalar_lea.vmem [#allocation5], %s188
        %s190 = smul.u32 2, %s20
        %s191 = smul.u32 2, %s20
        %v193 = vld [vmem:[%s167] sm:$0xff]
        %v194 = vld [vmem:[%s167 + $0x8] sm:$0xff]
        %v195 = vld [vmem:[%s167 + $0x10] sm:$0xff]
        %v196 = vld [vmem:[%s167 + $0x18] sm:$0xff]
        %v197 = vpack.c.bf16 %v194, %v193
        %v198 = vpack.c.bf16 %v196, %v195
        %v199 = vld [vmem:[%s2] sm:$0xf]
        %v200 = vld [vmem:[%s2 + $0x4] sm:$0xf]
        %v203 = vunpack.c.l.b16 %v199
        %v204 = vunpack.c.l.b16 %v200
        %v205 = vpack.c.b16 %v204, %v203
        %vm207 = vcmask 130048
        %v209 = vsel %vm207, %v197, 0
        %v212 = vsel %vm207, %v198, 0
        %214 = vmatprep.subr.bf16.mxu0 0
        %215 = vmatpush1.bf16.msra.mxu0 %v205
        %216 = vmatprep.subr.bf16.mxu0 0
        %217 = vmatpush1.bf16.msra.mxu0 0
        %218 = vmatprep.subr.bf16.mxu0 0
        %219 = vmatpush1.bf16.msra.mxu0 0
        %220 = vmatprep.subr.bf16.mxu0 0
        %221 = vmatpush1.bf16.msra.mxu0 0
        %222 = vmatprep.subr.bf16.mxu0 0
        %223 = vmatpush1.bf16.msra.mxu0 0
        %224 = vmatprep.subr.bf16.mxu0 0
        %225 = vmatpush1.bf16.msra.mxu0 0
        %226 = vmatprep.subr.bf16.mxu0 0
        %227 = vmatpush1.bf16.msra.mxu0 0
        %228 = vmatprep.subr.bf16.mxu0 0
        %229 = vmatpush1.bf16.msra.mxu0 0
        %230 = vmatprep.subr.bf16.mxu0 0
        %231 = vmatpush1.bf16.msra.mxu0 0
        %232 = vmatprep.subr.bf16.mxu0 0
        %233 = vmatpush1.bf16.msra.mxu0 0
        %234 = vmatprep.subr.bf16.mxu0 0
        %235 = vmatpush1.bf16.msra.mxu0 0
        %236 = vmatprep.subr.bf16.mxu0 0
        %237 = vmatpush1.bf16.msra.mxu0 0
        %238 = vmatprep.subr.bf16.mxu0 0
        %239 = vmatpush1.bf16.msra.mxu0 0
        %240 = vmatprep.subr.bf16.mxu0 0
        %241 = vmatpush1.bf16.msra.mxu0 0
        %242 = vmatprep.subr.bf16.mxu0 0
        %243 = vmatpush1.bf16.msra.mxu0 0
        %244 = vmatprep.subr.bf16.mxu0 0
        %245 = vmatpush1.bf16.msra.mxu0 0
        %246 = vmatprep.mubr.bf16.mxu0 0
        %247 = vmatmul.mubr.bf16.gmra.mrb[0].mxu0 %v209
        %v248 = vpop.f32.mrb[0].mxu0
        %v249 = vadd.f32 0.0, %v248
        %v250 = vpop.f32.mrb[0].mxu0
        %v251 = vpop.f32.mrb[0].mxu0
        %v252 = vadd.f32 0.0, %v251
        %v253 = vpop.f32.mrb[0].mxu0
        %254 = vmatprep.mubr.bf16.mxu0 0
        %255 = vmatmul.mubr.bf16.gmra.mrb[0].mxu0 %v212
        %v256 = vpop.f32.mrb[0].mxu0
        %v257 = vadd.f32 0.0, %v256
        %v258 = vpop.f32.mrb[0].mxu0
        %v259 = vpop.f32.mrb[0].mxu0
        %v260 = vadd.f32 0.0, %v259
        %v261 = vpop.f32.mrb[0].mxu0
        %262 = vdwg.mxu0
        %v263 = vld [vmem:[%s1] sm:$0xff]
        %v265 = vsel %vm207, %v263, 0
        %267 = vmatprep.subr.mxu0 0.0
        %268 = vmatpush1.msra.mxu0 %v249
        %269 = vmatprep.subr.mxu0 0.0
        %270 = vmatpush1.msra.mxu0 %v252
        %271 = vmatprep.subr.mxu0 0.0
        %272 = vmatpush1.msra.mxu0 0.0
        %273 = vmatprep.subr.mxu0 0.0
        %274 = vmatpush1.msra.mxu0 0.0
        %275 = vmatprep.subr.mxu0 0.0
        %276 = vmatpush1.msra.mxu0 0.0
        %277 = vmatprep.subr.mxu0 0.0
        %278 = vmatpush1.msra.mxu0 0.0
        %279 = vmatprep.subr.mxu0 0.0
        %280 = vmatpush1.msra.mxu0 0.0
        %281 = vmatprep.subr.mxu0 0.0
        %282 = vmatpush1.msra.mxu0 0.0
        %283 = vmatprep.subr.mxu0 0.0
        %284 = vmatpush1.msra.mxu0 0.0
        %285 = vmatprep.subr.mxu0 0.0
        %286 = vmatpush1.msra.mxu0 0.0
        %287 = vmatprep.subr.mxu0 0.0
        %288 = vmatpush1.msra.mxu0 0.0
        %289 = vmatprep.subr.mxu0 0.0
        %290 = vmatpush1.msra.mxu0 0.0
        %291 = vmatprep.subr.mxu0 0.0
        %292 = vmatpush1.msra.mxu0 0.0
        %293 = vmatprep.subr.mxu0 0.0
        %294 = vmatpush1.msra.mxu0 0.0
        %295 = vmatprep.subr.mxu0 0.0
        %296 = vmatpush1.msra.mxu0 0.0
        %297 = vmatprep.subr.mxu0 0.0
        %298 = vmatpush1.msra.mxu0 0.0
        %299 = vmatprep.subr.mxu0 0.0
        %300 = vmatpush1.msra.mxu0 0.0
        %301 = vmatprep.subr.mxu0 0.0
        %302 = vmatpush1.msra.mxu0 0.0
        %303 = vmatprep.subr.mxu0 0.0
        %304 = vmatpush1.msra.mxu0 0.0
        %305 = vmatprep.subr.mxu0 0.0
        %306 = vmatpush1.msra.mxu0 0.0
        %307 = vmatprep.subr.mxu0 0.0
        %308 = vmatpush1.msra.mxu0 0.0
        %309 = vmatprep.subr.mxu0 0.0
        %310 = vmatpush1.msra.mxu0 0.0
        %311 = vmatprep.subr.mxu0 0.0
        %312 = vmatpush1.msra.mxu0 0.0
        %313 = vmatprep.subr.mxu0 0.0
        %314 = vmatpush1.msra.mxu0 0.0
        %315 = vmatprep.subr.mxu0 0.0
        %316 = vmatpush1.msra.mxu0 0.0
        %317 = vmatprep.subr.mxu0 0.0
        %318 = vmatpush1.msra.mxu0 0.0
        %319 = vmatprep.subr.mxu0 0.0
        %320 = vmatpush1.msra.mxu0 0.0
        %321 = vmatprep.subr.mxu0 0.0
        %322 = vmatpush1.msra.mxu0 0.0
        %323 = vmatprep.subr.mxu0 0.0
        %324 = vmatpush1.msra.mxu0 0.0
        %325 = vmatprep.subr.mxu0 0.0
        %326 = vmatpush1.msra.mxu0 0.0
        %327 = vmatprep.subr.mxu0 0.0
        %328 = vmatpush1.msra.mxu0 0.0
        %329 = vmatprep.subr.mxu0 0.0
        %330 = vmatpush1.msra.mxu0 0.0
        %331 = vmatprep.mubr.f32.mxu0 0.0
        %332 = vmatmul.mubr.f32.gmra.mrb[0].mxu0 %v265
        %v333 = vpop.f32.mrb[0].mxu0
        %v334 = vadd.f32 0.0, %v333
        %v335 = vpop.f32.mrb[0].mxu0
        %336 = vdwg.mxu0
        %337 = vmatprep.subr.mxu0 0.0
        %338 = vmatpush1.msra.mxu0 %v257
        %339 = vmatprep.subr.mxu0 0.0
        %340 = vmatpush1.msra.mxu0 %v260
        %341 = vmatprep.subr.mxu0 0.0
        %342 = vmatpush1.msra.mxu0 0.0
        %343 = vmatprep.subr.mxu0 0.0
        %344 = vmatpush1.msra.mxu0 0.0
        %345 = vmatprep.subr.mxu0 0.0
        %346 = vmatpush1.msra.mxu0 0.0
        %347 = vmatprep.subr.mxu0 0.0
        %348 = vmatpush1.msra.mxu0 0.0
        %349 = vmatprep.subr.mxu0 0.0
        %350 = vmatpush1.msra.mxu0 0.0
        %351 = vmatprep.subr.mxu0 0.0
        %352 = vmatpush1.msra.mxu0 0.0
        %353 = vmatprep.subr.mxu0 0.0
        %354 = vmatpush1.msra.mxu0 0.0
        %355 = vmatprep.subr.mxu0 0.0
        %356 = vmatpush1.msra.mxu0 0.0
        %357 = vmatprep.subr.mxu0 0.0
        %358 = vmatpush1.msra.mxu0 0.0
        %359 = vmatprep.subr.mxu0 0.0
        %360 = vmatpush1.msra.mxu0 0.0
        %361 = vmatprep.subr.mxu0 0.0
        %362 = vmatpush1.msra.mxu0 0.0
        %363 = vmatprep.subr.mxu0 0.0
        %364 = vmatpush1.msra.mxu0 0.0
        %365 = vmatprep.subr.mxu0 0.0
        %366 = vmatpush1.msra.mxu0 0.0
        %367 = vmatprep.subr.mxu0 0.0
        %368 = vmatpush1.msra.mxu0 0.0
        %369 = vmatprep.subr.mxu0 0.0
        %370 = vmatpush1.msra.mxu0 0.0
        %371 = vmatprep.subr.mxu0 0.0
        %372 = vmatpush1.msra.mxu0 0.0
        %373 = vmatprep.subr.mxu0 0.0
        %374 = vmatpush1.msra.mxu0 0.0
        %375 = vmatprep.subr.mxu0 0.0
        %376 = vmatpush1.msra.mxu0 0.0
        %377 = vmatprep.subr.mxu0 0.0
        %378 = vmatpush1.msra.mxu0 0.0
        %379 = vmatprep.subr.mxu0 0.0
        %380 = vmatpush1.msra.mxu0 0.0
        %381 = vmatprep.subr.mxu0 0.0
        %382 = vmatpush1.msra.mxu0 0.0
        %383 = vmatprep.subr.mxu0 0.0
        %384 = vmatpush1.msra.mxu0 0.0
        %385 = vmatprep.subr.mxu0 0.0
        %386 = vmatpush1.msra.mxu0 0.0
        %387 = vmatprep.subr.mxu0 0.0
        %388 = vmatpush1.msra.mxu0 0.0
        %389 = vmatprep.subr.mxu0 0.0
        %390 = vmatpush1.msra.mxu0 0.0
        %391 = vmatprep.subr.mxu0 0.0
        %392 = vmatpush1.msra.mxu0 0.0
        %393 = vmatprep.subr.mxu0 0.0
        %394 = vmatpush1.msra.mxu0 0.0
        %395 = vmatprep.subr.mxu0 0.0
        %396 = vmatpush1.msra.mxu0 0.0
        %397 = vmatprep.subr.mxu0 0.0
        %398 = vmatpush1.msra.mxu0 0.0
        %399 = vmatprep.subr.mxu0 0.0
        %400 = vmatpush1.msra.mxu0 0.0
        %401 = vmatprep.mubr.f32.mxu0 0.0
        %402 = vmatmul.mubr.f32.gmra.mrb[0].mxu0 %v265
        %v403 = vpop.f32.mrb[0].mxu0
        %v404 = vadd.f32 0.0, %v403
        %v405 = vpop.f32.mrb[0].mxu0
        %406 = vdwg.mxu0
        %vm407 = vcmask 64512
        %408 = vst.msk [vmem:[%s189] sm:$0xff] %vm407, %v334
        %409 = vst.msk [vmem:[%s189 + $0x8] sm:$0xff] %vm407, %v404
        %s410 = sand.u32 %s96, 1
        %s411 = scalar_lea.sflag [#allocation4], %s410
        %s412 = sand.u32 %s96, 1
        %s413 = smul.addr %s412, 16
        %s414 = scalar_lea.vmem [#allocation5], %s413
        // Predicated region
        $region37: #{tpu_custom_call.1} parent=31 // pred_check
          %p415 = pneg %p106
        $region38: #{tpu_custom_call.1} parent=31 // pred_check_branch
          %417 = sbr.rel (%p415) target = $region40
        $region39: #{tpu_custom_call.1} parent=31 // pred_region
          %s418 = smul.u32 2, %s20
          %s420 = ssub.s32 256, 256
          %421 = vsyncadd %s411, %s420
          %s422 = smul.addr %s418, 128
          %s423 = scalar_lea.hbm %s3, %s422
          %s424 = sshll.u32 %s414, 4
          %s425 = int_to_ptr.vmem [resolvable:$true] %s424
          %430 = dma.vmem_to_hbm [thread:$0]  %s425, 256, %s423, %s411, 128, 128, 8
        $region40: #{tpu_custom_call.1} parent=31 // pred_fallthru
          _
      $region32: #{tpu_custom_call.1} parent=5 // pred_fallthru
        _
      %p431 = scmp.le.s32.totalorder 2, %s15
      // Predicated region
      $region41: #{tpu_custom_call.1} parent=5 // pred_check
        %p432 = pneg %p431
      $region42: #{tpu_custom_call.1} parent=5 // pred_check_branch
        %434 = sbr.rel (%p432) target = $region44
      $region43: #{tpu_custom_call.1} parent=5 // pred_region
        %s435 = ssub.s32 %s15, 2
        // Predicated region
        $region45: #{tpu_custom_call.1} parent=43 // pred_check
          %p436 = pneg %p112
        $region46: #{tpu_custom_call.1} parent=43 // pred_check_branch
          %438 = sbr.rel (%p436) target = $region48
        $region47: #{tpu_custom_call.1} parent=43 // pred_region
          %s439 = sand.u32 %s97, 1
          %s440 = scalar_lea.sflag [#allocation4], %s439
          %s441 = sand.u32 %s97, 1
          %s442 = smul.addr %s441, 16
          %s443 = scalar_lea.vmem [#allocation5], %s442
          %444 = dma.done %s440, 256
        $region48: #{tpu_custom_call.1} parent=43 // pred_fallthru
          _
      $region44: #{tpu_custom_call.1} parent=5 // pred_fallthru
        _
    $region6: #{tpu_custom_call.1} parent=1 // loop_footer
      %s19 = sadd.s32 1, %s15
    $region7: #{tpu_custom_call.1} parent=1 // loop_footer_branch
      %14 = sbr.rel target = $region3
    $region8: #{tpu_custom_call.1} parent=1 // loop_exit
      _
    %445 = vsyncpa [#allocation3], 1
    %s446 = scalar_lea.sflag [#allocation3], 1
    %447 = vsyncpa %s446, 1
    %448 = vsyncpa [#allocation4], 1
    %s449 = scalar_lea.sflag [#allocation4], 1
    %450 = vsyncpa %s449, 1

</llo_original>
